<compile_context>
chip_gen: v7x
topology: tpu7x:2x2x1
jax: 0.10.0
libtpu: 0.0.40
codegen_flags: <defaults>
</compile_context>

<pallas_src>
import functools

import jax
import jax.numpy as jnp
from jax import lax
from jax.experimental import pallas as pl
from jax.experimental.pallas import tpu as pltpu


def _round_up(x, m):
    return (x + m - 1) // m * m


def _conv_gemm_kernel(w_ref, b_ref, p_ref, o_ref):
    # w_ref: (C_out_pad, Kc_pad)  folded weights, resident across grid steps
    # b_ref: (C_out_pad, 1)       bias column (lane-broadcast on the VPU)
    # p_ref: (Kc_pad, TM)         im2col patch slab tile (output pixels on lanes)
    # o_ref: (C_out_pad, TM)      output tile, lane-dense -> unmasked stores
    o_ref[...] = (
        jnp.dot(w_ref[...], p_ref[...], preferred_element_type=jnp.float32)
        + b_ref[...]
    ).astype(o_ref.dtype)


@functools.partial(jax.jit, static_argnames=("stride", "padding"))
def conv2d_pallas(x, weight, bias, *, stride=1, padding=0):
    """x: (B, C_in, H, W) NCHW; weight: (C_out, C_in, K, K); bias: (C_out,)."""
    B, C_in, H, W = x.shape
    C_out, C_in_w, K, K2 = weight.shape
    assert C_in_w == C_in, "weight.shape[1] must equal input channels"
    assert K == K2, "only square kernels supported"
    OH = (H + 2 * padding - K) // stride + 1
    OW = (W + 2 * padding - K) // stride + 1
    M = B * OH * OW              # total output pixels (GEMM lane dimension)
    Kc = K * K * C_in            # contraction depth

    # --- wrapper-side im2col (tiny: Kc * M * 4 bytes), transposed so the GEMM
    #     output is (channels, pixels): NCHW reshape afterwards is nearly free.
    xp = jnp.pad(x, ((0, 0), (0, 0), (padding, padding), (padding, padding)))
    slabs = []
    for kh in range(K):
        for kw in range(K):
            s = lax.slice(
                xp,
                (0, 0, kh, kw),
                (B, C_in, kh + stride * (OH - 1) + 1, kw + stride * (OW - 1) + 1),
                (1, 1, stride, stride),
            )                                        # (B, C_in, OH, OW)
            slabs.append(s.reshape(B, C_in, OH * OW))
    patches = jnp.concatenate(slabs, axis=1)         # (B, Kc, OH*OW), tap-major/C_in-minor
    patches = jnp.transpose(patches, (1, 0, 2)).reshape(Kc, M)

    # --- padding for clean (8, 128) layout
    Kc_pad = _round_up(Kc, 8)                        # sublane multiple for the RHS
    C_out_pad = _round_up(C_out, 8)                  # sublane multiple for the output
    TM = min(512, _round_up(M, 128))                 # lane tile (>=128, sweet spot ~512)
    M_pad = _round_up(M, TM)

    patches = jnp.pad(patches, ((0, Kc_pad - Kc), (0, M_pad - M)))
    # weight column ordering must match patch row ordering: (kh, kw) major, C_in minor
    w2 = jnp.pad(weight.transpose(0, 2, 3, 1).reshape(C_out, Kc),
                 ((0, C_out_pad - C_out), (0, Kc_pad - Kc)))
    b2 = jnp.pad(bias.reshape(C_out, 1), ((0, C_out_pad - C_out), (0, 0)))

    grid = (M_pad // TM,)

    itemsize = jnp.dtype(x.dtype).itemsize
    flops = 2 * C_out * Kc * M
    bytes_accessed = (patches.size + w2.size + b2.size + C_out_pad * M_pad) * itemsize

    # VMEM footprint from actual tile math: double-buffered streaming tiles
    # (patch + output) plus the resident weight/bias tile.
    tile_bytes = (2 * (Kc_pad * TM + C_out_pad * TM)
                  + C_out_pad * Kc_pad + C_out_pad) * itemsize
    vmem_limit = int(min(max(2 * tile_bytes, 4 << 20), 64 << 20))

    out = pl.pallas_call(
        _conv_gemm_kernel,
        out_shape=jax.ShapeDtypeStruct((C_out_pad, M_pad), x.dtype),
        grid_spec=pltpu.PrefetchScalarGridSpec(
            num_scalar_prefetch=0,
            grid=grid,
            in_specs=[
                pl.BlockSpec((C_out_pad, Kc_pad), lambda i: (0, 0)),  # weights, resident
                pl.BlockSpec((C_out_pad, 1), lambda i: (0, 0)),       # bias, resident
                pl.BlockSpec((Kc_pad, TM), lambda i: (0, i)),         # patch slab tile
            ],
            out_specs=pl.BlockSpec((C_out_pad, TM), lambda i: (0, i)),
        ),
        compiler_params=pltpu.CompilerParams(
            dimension_semantics=("parallel",),
            vmem_limit_bytes=vmem_limit,
        ),
        cost_estimate=pl.CostEstimate(
            flops=flops, transcendentals=0, bytes_accessed=bytes_accessed),
    )(w2, b2, patches)

    # Drop padding; pixel axis is b-major so this is reshape + a tiny
    # batch/channel transpose (16 KB here), no big layout pass.
    y = out[:C_out, :M].reshape(C_out, B, OH, OW).transpose(1, 0, 2, 3)
    return y


def reference_conv2d(x, weight, bias, stride, padding):
    """Pure-JAX reference (standard conv semantics)."""
    dn = jax.lax.conv_dimension_numbers(x.shape, weight.shape,
                                        ("NCHW", "OIHW", "NCHW"))
    y = jax.lax.conv_general_dilated(
        x, weight, window_strides=(stride, stride),
        padding=((padding, padding), (padding, padding)),
        dimension_numbers=dn,
    )
    return y + bias.reshape(1, -1, 1, 1)


if __name__ == "__main__":
    # Deterministic parameter init (mirrors torch.randn shapes in __init__).
    in_channels, out_channels, kernel_size = 4, 8, 3
    stride, padding = 1, 1
    B, H, W = 2, 16, 16

    key = jax.random.PRNGKey(0)
    k_w, k_b, k_sigma, k_mu, k_x = jax.random.split(key, 5)
    weight = jax.random.normal(
        k_w, (out_channels, in_channels, kernel_size, kernel_size), dtype=jnp.float32
    )
    bias = jax.random.normal(k_b, (out_channels,), dtype=jnp.float32)
    sigma = jax.random.normal(k_sigma, (1,), dtype=jnp.float32)  # unused in forward
    mu = jax.random.normal(k_mu, (1,), dtype=jnp.float32)        # unused in forward

    x = jax.random.normal(k_x, (B, in_channels, H, W), dtype=jnp.float32)

    y = conv2d_pallas(x, weight, bias, stride=stride, padding=padding)
    y = jax.block_until_ready(y)

    y_ref = reference_conv2d(x, weight, bias, stride, padding)
    assert y.shape == y_ref.shape, (y.shape, y_ref.shape)
    assert jnp.allclose(y, y_ref, atol=1e-4, rtol=1e-4), "mismatch vs reference conv"

    print("KERNEL_OK")
</pallas_src>

<mosaic_0001>
module attributes {stable_mosaic.version = 11 : i64} {
  func.func @_conv_gemm_kernel(%arg0: i32, %arg1: memref<8x40xf32, #tpu.memory_space<vmem>>, %arg2: memref<8x1xf32, #tpu.memory_space<vmem>>, %arg3: memref<40x512xf32, #tpu.memory_space<vmem>>, %arg4: memref<8x512xf32, #tpu.memory_space<vmem>>) attributes {dimension_semantics = [#tpu.dimension_semantics<parallel>], iteration_bounds = array<i64: 1>, scalar_prefetch = 0 : i64, scratch_operands = 0 : i64, tpu.core_type = #tpu.core_type<tc>, window_params = [{pipeline_mode = #tpu.pipeline_mode<synchronous>, transform_indices = @transform_0, window_bounds = array<i64: 8, 40>}, {pipeline_mode = #tpu.pipeline_mode<synchronous>, transform_indices = @transform_1, window_bounds = array<i64: 8, 1>}, {transform_indices = @transform_2, window_bounds = array<i64: 40, 512>}, {transform_indices = @transform_3, window_bounds = array<i64: 8, 512>}]} {
    %c0 = arith.constant 0 : index
    %c0_0 = arith.constant 0 : index
    %0 = vector.load %arg1[%c0, %c0_0] : memref<8x40xf32, #tpu.memory_space<vmem>>, vector<8x40xf32>
    %c0_1 = arith.constant 0 : index
    %c0_2 = arith.constant 0 : index
    %1 = vector.load %arg3[%c0_1, %c0_2] : memref<40x512xf32, #tpu.memory_space<vmem>>, vector<40x512xf32>
    %cst = arith.constant dense<0.000000e+00> : vector<8x512xf32>
    %2 = tpu.matmul %0, %1, %cst {dimension_numbers = #tpu.dot_dimension_numbers<[1], [0], [0], [1], [0, 0, 1, 1], [], []>} : vector<8x40xf32>, vector<40x512xf32>, vector<8x512xf32> -> vector<8x512xf32>
    %c0_3 = arith.constant 0 : index
    %c0_4 = arith.constant 0 : index
    %3 = vector.load %arg2[%c0_3, %c0_4] : memref<8x1xf32, #tpu.memory_space<vmem>>, vector<8x1xf32>
    %4 = vector.broadcast %3 : vector<8x1xf32> to vector<8x512xf32>
    %5 = arith.addf %2, %4 : vector<8x512xf32>
    %c0_5 = arith.constant 0 : index
    %c0_6 = arith.constant 0 : index
    %6 = vector.load %arg4[%c0_5, %c0_6] : memref<8x512xf32, #tpu.memory_space<vmem>>, vector<8x512xf32>
    tpu.vector_store %arg4[%c0_5, %c0_6], %5 {strides = array<i32>} : memref<8x512xf32, #tpu.memory_space<vmem>>, vector<8x512xf32>,
    return
  }
  func.func @transform_0(%arg0: i32) -> (i32, i32) {
    %c0_i32 = arith.constant 0 : i32
    %c0_i32_0 = arith.constant 0 : i32
    %c0_i32_1 = arith.constant 0 : i32
    return %c0_i32, %c0_i32_0 : i32, i32
  }
  func.func @transform_1(%arg0: i32) -> (i32, i32) {
    %c0_i32 = arith.constant 0 : i32
    %c0_i32_0 = arith.constant 0 : i32
    %c0_i32_1 = arith.constant 0 : i32
    return %c0_i32, %c0_i32_0 : i32, i32
  }
  func.func @transform_2(%arg0: i32) -> (i32, i32) {
    %c0_i32 = arith.constant 0 : i32
    %c0_i32_0 = arith.constant 0 : i32
    return %c0_i32, %arg0 : i32, i32
  }
  func.func @transform_3(%arg0: i32) -> (i32, i32) {
    %c0_i32 = arith.constant 0 : i32
    %c0_i32_0 = arith.constant 0 : i32
    return %c0_i32, %arg0 : i32, i32
  }
}

</mosaic_0001>

<llo_original>
// kernel: conv2d_pallas.1
$region0: #{conv2d_pallas.1}
  #allocation0 [shape = 'u32[]', space=smem, size = 0x4, offset = 0x4, fixed_abs, tag = 'smem constant byte address 0x4 - core index']
  #allocation1 [shape = 'u32[144,128]{1,0:T(1,128)}', space=vmem, size = 0x12000, scoped, tag = 'internal scratch']
  %s0 = inlined_call_operand.vmem [shape: f32[8,40], index: 0, kind: input, shape index: {}]
  %s1 = inlined_call_operand.vmem [shape: f32[8,1], index: 1, kind: input, shape index: {}]
  %s2 = inlined_call_operand.vmem [shape: f32[40,512], index: 2, kind: input, shape index: {}]
  %s3 = inlined_call_operand.vmem [shape: f32[8,512], index: 3, kind: output, shape index: {}]
  %s4 = sld [smem:[#allocation0]]
  $region22: #{conv2d_pallas.1} parent=0
    _
  %s6 = ssub.s32 1, %s4
  %s7 = scalar_select 0, %s6, %s4
  // Predicated region
  $region2: #{conv2d_pallas.1} parent=0 // pred_check
    _
  $region3: #{conv2d_pallas.1} parent=0 // pred_check_branch
    %9 = sbr.rel (0) target = $region5
  $region4: #{conv2d_pallas.1} parent=0 // pred_region
    _
  $region5: #{conv2d_pallas.1} parent=0 // pred_fallthru
    _
  // Predicated region
  $region6: #{conv2d_pallas.1} parent=0 // pred_check
    _
  $region7: #{conv2d_pallas.1} parent=0 // pred_check_branch
    %11 = sbr.rel (0) target = $region9
  $region8: #{conv2d_pallas.1} parent=0 // pred_region
    _
  $region9: #{conv2d_pallas.1} parent=0 // pred_fallthru
    _
  // Predicated region
  $region10: #{conv2d_pallas.1} parent=0 // pred_check
    _
  $region11: #{conv2d_pallas.1} parent=0 // pred_check_branch
    %13 = sbr.rel (0) target = $region13
  $region12: #{conv2d_pallas.1} parent=0 // pred_region
    _
  $region13: #{conv2d_pallas.1} parent=0 // pred_fallthru
    _
  %v14 = vld [vmem:[%s0] sm:$0xff]
  %v15 = vld [vmem:[%s2] sm:$0xff]
  %v16 = vld [vmem:[%s2 + $0x8] sm:$0xff]
  %v17 = vld [vmem:[%s2 + $0x10] sm:$0xff]
  %v18 = vld [vmem:[%s2 + $0x18] sm:$0xff]
  %v19 = vld [vmem:[%s2 + $0x20] sm:$0xff]
  %v20 = vld [vmem:[%s2 + $0x28] sm:$0xff]
  %v21 = vld [vmem:[%s2 + $0x30] sm:$0xff]
  %v22 = vld [vmem:[%s2 + $0x38] sm:$0xff]
  %v23 = vld [vmem:[%s2 + $0x40] sm:$0xff]
  %v24 = vld [vmem:[%s2 + $0x48] sm:$0xff]
  %v25 = vld [vmem:[%s2 + $0x50] sm:$0xff]
  %v26 = vld [vmem:[%s2 + $0x58] sm:$0xff]
  %v27 = vld [vmem:[%s2 + $0x60] sm:$0xff]
  %v28 = vld [vmem:[%s2 + $0x68] sm:$0xff]
  %v29 = vld [vmem:[%s2 + $0x70] sm:$0xff]
  %v30 = vld [vmem:[%s2 + $0x78] sm:$0xff]
  %v31 = vld [vmem:[%s2 + $0x80] sm:$0xff]
  %v32 = vld [vmem:[%s2 + $0x88] sm:$0xff]
  %v33 = vld [vmem:[%s2 + $0x90] sm:$0xff]
  %v34 = vld [vmem:[%s2 + $0x98] sm:$0xff]
  %v35 = vld [vmem:[%s1] sm:$0xff]
  %37 = vset.pattern.permute.xlu0 0
  %38 = vperm.xlu0 %37, %v35
  %v39 = vpop.permute.xlu0 %38
  %vm41 = vcmask 326656
  %v43 = vsel %vm41, %v14, 0
  %45 = vmatprep.subr.mxu0 %v16
  %46 = vmatpush1.msra.mxu0 %v15
  %47 = vmatprep.subr.mxu0 %v20
  %48 = vmatpush1.msra.mxu0 %v19
  %49 = vmatprep.subr.mxu0 %v24
  %50 = vmatpush1.msra.mxu0 %v23
  %51 = vmatprep.subr.mxu0 %v28
  %52 = vmatpush1.msra.mxu0 %v27
  %53 = vmatprep.subr.mxu0 %v32
  %54 = vmatpush1.msra.mxu0 %v31
  %55 = vmatprep.subr.mxu0 0.0
  %56 = vmatpush1.msra.mxu0 0.0
  %57 = vmatprep.subr.mxu0 0.0
  %58 = vmatpush1.msra.mxu0 0.0
  %59 = vmatprep.subr.mxu0 0.0
  %60 = vmatpush1.msra.mxu0 0.0
  %61 = vmatprep.subr.mxu0 0.0
  %62 = vmatpush1.msra.mxu0 0.0
  %63 = vmatprep.subr.mxu0 0.0
  %64 = vmatpush1.msra.mxu0 0.0
  %65 = vmatprep.subr.mxu0 0.0
  %66 = vmatpush1.msra.mxu0 0.0
  %67 = vmatprep.subr.mxu0 0.0
  %68 = vmatpush1.msra.mxu0 0.0
  %69 = vmatprep.subr.mxu0 0.0
  %70 = vmatpush1.msra.mxu0 0.0
  %71 = vmatprep.subr.mxu0 0.0
  %72 = vmatpush1.msra.mxu0 0.0
  %73 = vmatprep.subr.mxu0 0.0
  %74 = vmatpush1.msra.mxu0 0.0
  %75 = vmatprep.subr.mxu0 0.0
  %76 = vmatpush1.msra.mxu0 0.0
  %77 = vmatprep.subr.mxu0 0.0
  %78 = vmatpush1.msra.mxu0 0.0
  %79 = vmatprep.subr.mxu0 0.0
  %80 = vmatpush1.msra.mxu0 0.0
  %81 = vmatprep.subr.mxu0 0.0
  %82 = vmatpush1.msra.mxu0 0.0
  %83 = vmatprep.subr.mxu0 0.0
  %84 = vmatpush1.msra.mxu0 0.0
  %85 = vmatprep.subr.mxu0 0.0
  %86 = vmatpush1.msra.mxu0 0.0
  %87 = vmatprep.subr.mxu0 0.0
  %88 = vmatpush1.msra.mxu0 0.0
  %89 = vmatprep.subr.mxu0 0.0
  %90 = vmatpush1.msra.mxu0 0.0
  %91 = vmatprep.subr.mxu0 0.0
  %92 = vmatpush1.msra.mxu0 0.0
  %93 = vmatprep.subr.mxu0 0.0
  %94 = vmatpush1.msra.mxu0 0.0
  %95 = vmatprep.subr.mxu0 0.0
  %96 = vmatpush1.msra.mxu0 0.0
  %97 = vmatprep.subr.mxu0 0.0
  %98 = vmatpush1.msra.mxu0 0.0
  %99 = vmatprep.subr.mxu0 0.0
  %100 = vmatpush1.msra.mxu0 0.0
  %101 = vmatprep.subr.mxu0 0.0
  %102 = vmatpush1.msra.mxu0 0.0
  %103 = vmatprep.subr.mxu0 0.0
  %104 = vmatpush1.msra.mxu0 0.0
  %105 = vmatprep.subr.mxu0 0.0
  %106 = vmatpush1.msra.mxu0 0.0
  %107 = vmatprep.subr.mxu0 0.0
  %108 = vmatpush1.msra.mxu0 0.0
  %109 = vmatprep.mubr.f32.mxu0 0.0
  %110 = vmatmul.mubr.f32.gmra.mrb[0].mxu0 %v43
  %v111 = vpop.f32.mrb[0].mxu0
  %v112 = vadd.f32 %v39, %v111
  %v113 = vpop.f32.mrb[0].mxu0
  %v114 = vadd.f32 %v39, %v113
  %115 = vdwg.mxu0
  %116 = vmatprep.subr.mxu0 %v18
  %117 = vmatpush1.msra.mxu0 %v17
  %118 = vmatprep.subr.mxu0 %v22
  %119 = vmatpush1.msra.mxu0 %v21
  %120 = vmatprep.subr.mxu0 %v26
  %121 = vmatpush1.msra.mxu0 %v25
  %122 = vmatprep.subr.mxu0 %v30
  %123 = vmatpush1.msra.mxu0 %v29
  %124 = vmatprep.subr.mxu0 %v34
  %125 = vmatpush1.msra.mxu0 %v33
  %126 = vmatprep.subr.mxu0 0.0
  %127 = vmatpush1.msra.mxu0 0.0
  %128 = vmatprep.subr.mxu0 0.0
  %129 = vmatpush1.msra.mxu0 0.0
  %130 = vmatprep.subr.mxu0 0.0
  %131 = vmatpush1.msra.mxu0 0.0
  %132 = vmatprep.subr.mxu0 0.0
  %133 = vmatpush1.msra.mxu0 0.0
  %134 = vmatprep.subr.mxu0 0.0
  %135 = vmatpush1.msra.mxu0 0.0
  %136 = vmatprep.subr.mxu0 0.0
  %137 = vmatpush1.msra.mxu0 0.0
  %138 = vmatprep.subr.mxu0 0.0
  %139 = vmatpush1.msra.mxu0 0.0
  %140 = vmatprep.subr.mxu0 0.0
  %141 = vmatpush1.msra.mxu0 0.0
  %142 = vmatprep.subr.mxu0 0.0
  %143 = vmatpush1.msra.mxu0 0.0
  %144 = vmatprep.subr.mxu0 0.0
  %145 = vmatpush1.msra.mxu0 0.0
  %146 = vmatprep.subr.mxu0 0.0
  %147 = vmatpush1.msra.mxu0 0.0
  %148 = vmatprep.subr.mxu0 0.0
  %149 = vmatpush1.msra.mxu0 0.0
  %150 = vmatprep.subr.mxu0 0.0
  %151 = vmatpush1.msra.mxu0 0.0
  %152 = vmatprep.subr.mxu0 0.0
  %153 = vmatpush1.msra.mxu0 0.0
  %154 = vmatprep.subr.mxu0 0.0
  %155 = vmatpush1.msra.mxu0 0.0
  %156 = vmatprep.subr.mxu0 0.0
  %157 = vmatpush1.msra.mxu0 0.0
  %158 = vmatprep.subr.mxu0 0.0
  %159 = vmatpush1.msra.mxu0 0.0
  %160 = vmatprep.subr.mxu0 0.0
  %161 = vmatpush1.msra.mxu0 0.0
  %162 = vmatprep.subr.mxu0 0.0
  %163 = vmatpush1.msra.mxu0 0.0
  %164 = vmatprep.subr.mxu0 0.0
  %165 = vmatpush1.msra.mxu0 0.0
  %166 = vmatprep.subr.mxu0 0.0
  %167 = vmatpush1.msra.mxu0 0.0
  %168 = vmatprep.subr.mxu0 0.0
  %169 = vmatpush1.msra.mxu0 0.0
  %170 = vmatprep.subr.mxu0 0.0
  %171 = vmatpush1.msra.mxu0 0.0
  %172 = vmatprep.subr.mxu0 0.0
  %173 = vmatpush1.msra.mxu0 0.0
  %174 = vmatprep.subr.mxu0 0.0
  %175 = vmatpush1.msra.mxu0 0.0
  %176 = vmatprep.subr.mxu0 0.0
  %177 = vmatpush1.msra.mxu0 0.0
  %178 = vmatprep.subr.mxu0 0.0
  %179 = vmatpush1.msra.mxu0 0.0
  %180 = vmatprep.mubr.f32.mxu0 0.0
  %181 = vmatmul.mubr.f32.gmra.mrb[0].mxu0 %v43
  %v182 = vpop.f32.mrb[0].mxu0
  %v183 = vadd.f32 %v39, %v182
  %v184 = vpop.f32.mrb[0].mxu0
  %v185 = vadd.f32 %v39, %v184
  %186 = vdwg.mxu0
  %187 = vst [vmem:[%s3] sm:$0xff] %v112
  %188 = vst [vmem:[%s3 + $0x8] sm:$0xff] %v114
  %189 = vst [vmem:[%s3 + $0x10] sm:$0xff] %v183
  %190 = vst [vmem:[%s3 + $0x18] sm:$0xff] %v185
  // Predicated region
  $region14: #{conv2d_pallas.1} parent=0 // pred_check
    _
  $region15: #{conv2d_pallas.1} parent=0 // pred_check_branch
    %192 = sbr.rel (0) target = $region17
  $region16: #{conv2d_pallas.1} parent=0 // pred_region
    _
  $region17: #{conv2d_pallas.1} parent=0 // pred_fallthru
    _
  // Predicated region
  $region18: #{conv2d_pallas.1} parent=0 // pred_check
    _
  $region19: #{conv2d_pallas.1} parent=0 // pred_check_branch
    %194 = sbr.rel (0) target = $region21
  $region20: #{conv2d_pallas.1} parent=0 // pred_region
    _
  $region21: #{conv2d_pallas.1} parent=0 // pred_fallthru
    _

</llo_original>
